<compile_context>
chip_gen: v7x
topology: tpu7x:2x2x1
jax: 0.10.0
libtpu: 0.0.40
codegen_flags: <defaults>
</compile_context>

<pallas_src>
import functools

import jax
import jax.numpy as jnp
from jax import lax
from jax.experimental import pallas as pl
from jax.experimental.pallas import tpu as pltpu


# ---------------------------------------------------------------------------
# Kernels
# ---------------------------------------------------------------------------

def _layernorm_kernel(x_ref, w_ref, b_ref, o_ref, *, eps):
    # x_ref: (Rt, D); w_ref, b_ref: (1, D); o_ref: (Rt, D). Two-pass moments
    # in fp32 (matches nn.LayerNorm, numerically stable).
    x = x_ref[...].astype(jnp.float32)
    mean = jnp.mean(x, axis=-1, keepdims=True)
    xc = x - mean
    var = jnp.mean(xc * xc, axis=-1, keepdims=True)
    y = xc * lax.rsqrt(var + eps)
    w = w_ref[...].astype(jnp.float32)   # (1, D) broadcasts over rows
    b = b_ref[...].astype(jnp.float32)
    o_ref[...] = (y * w + b).astype(o_ref.dtype)


def _layernorm_packed_kernel(x_ref, w_ref, b_ref, avg_ref, o_ref, *, eps):
    # Narrow-dim path: each kernel row holds `pack` logical rows side by side
    # (width = pack*dim = 128 lanes, fully dense). avg_ref is a resident
    # (width, width) block-diagonal averaging matrix: x @ avg broadcasts each
    # segment's mean back over that segment's lanes. Two 128x128 MXU matmuls
    # (MXU is otherwise idle) replace lane-sparse masked reductions/stores.
    x = x_ref[...].astype(jnp.float32)          # (Rt, width)
    avg = avg_ref[...]                          # (width, width), fp32
    mean = jnp.dot(x, avg, preferred_element_type=jnp.float32)
    xc = x - mean
    var = jnp.dot(xc * xc, avg, preferred_element_type=jnp.float32)
    y = xc * lax.rsqrt(var + eps)
    w = w_ref[...].astype(jnp.float32)          # (1, width)
    b = b_ref[...].astype(jnp.float32)
    o_ref[...] = (y * w + b).astype(o_ref.dtype)


# ---------------------------------------------------------------------------
# Tiling helpers
# ---------------------------------------------------------------------------

def _cdiv(a, b):
    return -(-a // b)


def _round_up(x, m):
    return _cdiv(x, m) * m


def _vmem_limit_bytes():
    """Scoped VMEM request with headroom for Mosaic internal scratch."""
    cap = 64 << 20  # conservative fallback (works on v7x/v6e/v5e)
    try:
        info = pltpu.get_tpu_info()
        cap = int(getattr(info, "vmem_capacity_bytes", cap)) or cap
    except Exception:
        pass
    # v7x (64 MiB phys) -> 48 MiB; v5e/v6e (128 MiB phys) -> 96 MiB.
    return max(32 << 20, min(cap - (16 << 20), int(cap * 0.75)))


def _sublane_multiple(dtype):
    itemsize = jnp.dtype(dtype).itemsize
    return {4: 8, 2: 16, 1: 32}.get(itemsize, 8)


def _pick_row_tile(rows, width, dtype, target_block_bytes):
    """Rows per block: sublane-aligned, sized by a per-block byte budget,
    preferring an even number of grid steps (balanced v7x megacore split)."""
    sub = _sublane_multiple(dtype)
    itemsize = jnp.dtype(dtype).itemsize
    row_bytes = max(1, width * itemsize)
    rows_pad = _round_up(max(rows, 1), sub)

    rt = max(sub, (target_block_bytes // row_bytes) // sub * sub)

    if rt >= rows_pad:
        # Whole (padded) extent fits one block under the budget. Only split
        # for megacore if the problem is big enough to amortize the ~0.35us
        # per-grid-step overhead.
        if rows_pad >= 2 * sub and rows_pad * row_bytes >= (2 << 20):
            return _round_up(_cdiv(rows_pad, 2), sub)
        return rows_pad

    steps = _cdiv(rows_pad, rt)
    if steps % 2 == 1:
        steps += 1
        rt = max(sub, _round_up(_cdiv(rows_pad, steps), sub))
    return rt


# ---------------------------------------------------------------------------
# Wrapper
# ---------------------------------------------------------------------------

def layer_norm_pallas(x, weight, bias, *, eps=1e-5):
    """LayerNorm over the last dim of x. weight/bias have shape (dim,)."""
    orig_shape = x.shape
    dim = int(orig_shape[-1])
    rows = 1
    for s in orig_shape[:-1]:
        rows *= int(s)

    vmem_limit = _vmem_limit_bytes()
    target_block = max(1 << 20, min(8 << 20, vmem_limit // 8))
    compiler_params = pltpu.CompilerParams(
        dimension_semantics=("parallel",),
        vmem_limit_bytes=vmem_limit,
    )

    x2 = x.reshape(rows, dim)

    # Narrow-dim lane-dense path: pack k = 128/dim logical rows per kernel row.
    pack = 128 // dim if (dim < 128 and 128 % dim == 0) else 1

    if pack > 1:
        width = pack * dim  # == 128 lanes, dense output stores
        kernel_rows = _cdiv(rows, pack)
        rt = _pick_row_tile(kernel_rows, width, x.dtype, target_block)
        padded_kernel_rows = _round_up(kernel_rows, rt)
        padded_rows = padded_kernel_rows * pack

        if padded_rows != rows:
            # Zero rows are harmless through LayerNorm (output = bias) and are
            # sliced off below.
            x2 = jnp.pad(x2, ((0, padded_rows - rows), (0, 0)))
        xk = x2.reshape(padded_kernel_rows, width)

        w2 = jnp.tile(weight.reshape(1, dim), (1, pack))
        b2 = jnp.tile(bias.reshape(1, dim), (1, pack))

        # Block-diagonal averaging matrix: avg[i, j] = 1/dim iff i, j belong
        # to the same packed segment.
        seg = jnp.arange(width, dtype=jnp.int32) // dim
        avg = (seg[:, None] == seg[None, :]).astype(jnp.float32) / float(dim)

        grid = (padded_kernel_rows // rt,)
        kern = functools.partial(_layernorm_packed_kernel, eps=eps)
        out = pl.pallas_call(
            kern,
            out_shape=jax.ShapeDtypeStruct((padded_kernel_rows, width), x.dtype),
            grid_spec=pl.GridSpec(
                grid=grid,
                in_specs=[
                    pl.BlockSpec((rt, width), lambda i: (i, 0)),
                    pl.BlockSpec((1, width), lambda i: (0, 0)),      # weight, resident
                    pl.BlockSpec((1, width), lambda i: (0, 0)),      # bias, resident
                    pl.BlockSpec((width, width), lambda i: (0, 0)),  # avg, resident
                ],
                out_specs=pl.BlockSpec((rt, width), lambda i: (i, 0)),
            ),
            compiler_params=compiler_params,
        )(xk, w2, b2, avg)

        out = out.reshape(padded_rows, dim)
        if padded_rows != rows:
            out = out[:rows]
        return out.reshape(orig_shape)

    # General path: dim >= 128 (or a non-divisor of 128); dim sits on lanes.
    rt = _pick_row_tile(rows, dim, x.dtype, target_block)
    padded_rows = _round_up(rows, rt)
    if padded_rows != rows:
        x2 = jnp.pad(x2, ((0, padded_rows - rows), (0, 0)))

    w2 = weight.reshape(1, dim)
    b2 = bias.reshape(1, dim)

    grid = (padded_rows // rt,)
    kern = functools.partial(_layernorm_kernel, eps=eps)
    out = pl.pallas_call(
        kern,
        out_shape=jax.ShapeDtypeStruct((padded_rows, dim), x.dtype),
        grid_spec=pl.GridSpec(
            grid=grid,
            in_specs=[
                pl.BlockSpec((rt, dim), lambda i: (i, 0)),
                pl.BlockSpec((1, dim), lambda i: (0, 0)),
                pl.BlockSpec((1, dim), lambda i: (0, 0)),
            ],
            out_specs=pl.BlockSpec((rt, dim), lambda i: (i, 0)),
        ),
        compiler_params=compiler_params,
    )(x2, w2, b2)

    if padded_rows != rows:
        out = out[:rows]
    return out.reshape(orig_shape)


def pre_norm(x, weight, bias, fn=None, *, eps=1e-5):
    """PreNorm.forward: fn(LayerNorm(x))."""
    y = layer_norm_pallas(x, weight, bias, eps=eps)
    # TODO(synk): `fn` is an arbitrary wrapped nn.Module in the PyTorch spec;
    # applied here as a plain callable (identity by default) rather than fused.
    if fn is not None:
        y = fn(y)
    return y


# ---------------------------------------------------------------------------
# Demo / correctness check
# ---------------------------------------------------------------------------

def _ref_layernorm(x, weight, bias, eps):
    mean = x.mean(axis=-1, keepdims=True)
    var = ((x - mean) ** 2).mean(axis=-1, keepdims=True)
    return (x - mean) / jnp.sqrt(var + eps) * weight + bias


if __name__ == "__main__":
    eps = 1e-5
    key = jax.random.PRNGKey(0)
    k_x, k_w, k_b, k_x2 = jax.random.split(key, 4)

    # Small shapes consistent with the module: batch=2, seq=8, hidden(dim)=32.
    B, S, D = 2, 8, 32
    x = jax.random.normal(k_x, (B, S, D), dtype=jnp.float32)
    weight = 1.0 + 0.1 * jax.random.normal(k_w, (D,), dtype=jnp.float32)
    bias = 0.1 * jax.random.normal(k_b, (D,), dtype=jnp.float32)

    out = pre_norm(x, weight, bias, fn=None, eps=eps)
    out = jax.block_until_ready(out)
    ref = _ref_layernorm(x, weight, bias, eps)
    assert out.shape == (B, S, D)
    assert jnp.allclose(out, ref, atol=1e-5, rtol=1e-5)

    # Also exercise the wide-dim path with non-dividing rows (padding branch).
    B2, S2, D2 = 2, 7, 128
    x_w = jax.random.normal(k_x2, (B2, S2, D2), dtype=jnp.float32)
    w_w = jnp.ones((D2,), dtype=jnp.float32)
    b_w = jnp.zeros((D2,), dtype=jnp.float32)
    out_w = jax.block_until_ready(pre_norm(x_w, w_w, b_w, fn=None, eps=eps))
    ref_w = _ref_layernorm(x_w, w_w, b_w, eps)
    assert out_w.shape == (B2, S2, D2)
    assert jnp.allclose(out_w, ref_w, atol=1e-5, rtol=1e-5)

    print("KERNEL_OK")
</pallas_src>

<mosaic_0001>
module attributes {stable_mosaic.version = 11 : i64} {
  func.func @_layernorm_packed_kernel(%arg0: i32, %arg1: memref<8x128xf32, #tpu.memory_space<vmem>>, %arg2: memref<1x128xf32, #tpu.memory_space<vmem>>, %arg3: memref<1x128xf32, #tpu.memory_space<vmem>>, %arg4: memref<128x128xf32, #tpu.memory_space<vmem>>, %arg5: memref<8x128xf32, #tpu.memory_space<vmem>>) attributes {dimension_semantics = [#tpu.dimension_semantics<parallel>], iteration_bounds = array<i64: 1>, scalar_prefetch = 0 : i64, scratch_operands = 0 : i64, tpu.core_type = #tpu.core_type<tc>, window_params = [{transform_indices = @transform_0, window_bounds = array<i64: 8, 128>}, {pipeline_mode = #tpu.pipeline_mode<synchronous>, transform_indices = @transform_1, window_bounds = array<i64: 1, 128>}, {pipeline_mode = #tpu.pipeline_mode<synchronous>, transform_indices = @transform_2, window_bounds = array<i64: 1, 128>}, {pipeline_mode = #tpu.pipeline_mode<synchronous>, transform_indices = @transform_3, window_bounds = array<i64: 128, 128>}, {transform_indices = @transform_4, window_bounds = array<i64: 8, 128>}]} {
    %c0 = arith.constant 0 : index
    %c0_0 = arith.constant 0 : index
    %0 = vector.load %arg1[%c0, %c0_0] : memref<8x128xf32, #tpu.memory_space<vmem>>, vector<8x128xf32>
    %c0_1 = arith.constant 0 : index
    %c0_2 = arith.constant 0 : index
    %1 = vector.load %arg4[%c0_1, %c0_2] : memref<128x128xf32, #tpu.memory_space<vmem>>, vector<128x128xf32>
    %cst = arith.constant dense<0.000000e+00> : vector<8x128xf32>
    %2 = tpu.matmul %0, %1, %cst {dimension_numbers = #tpu.dot_dimension_numbers<[1], [0], [0], [1], [0, 0, 1, 1], [], []>} : vector<8x128xf32>, vector<128x128xf32>, vector<8x128xf32> -> vector<8x128xf32>
    %3 = arith.subf %0, %2 : vector<8x128xf32>
    %4 = arith.mulf %3, %3 : vector<8x128xf32>
    %cst_3 = arith.constant dense<0.000000e+00> : vector<8x128xf32>
    %5 = tpu.matmul %4, %1, %cst_3 {dimension_numbers = #tpu.dot_dimension_numbers<[1], [0], [0], [1], [0, 0, 1, 1], [], []>} : vector<8x128xf32>, vector<128x128xf32>, vector<8x128xf32> -> vector<8x128xf32>
    %cst_4 = arith.constant 9.99999974E-6 : f32
    %6 = vector.broadcast %cst_4 : f32 to vector<8x128xf32>
    %7 = arith.addf %5, %6 : vector<8x128xf32>
    %8 = math.rsqrt %7 : vector<8x128xf32>
    %9 = arith.mulf %3, %8 : vector<8x128xf32>
    %c0_5 = arith.constant 0 : index
    %c0_6 = arith.constant 0 : index
    %10 = vector.load %arg2[%c0_5, %c0_6] : memref<1x128xf32, #tpu.memory_space<vmem>>, vector<1x128xf32>
    %c0_7 = arith.constant 0 : index
    %c0_8 = arith.constant 0 : index
    %11 = vector.load %arg3[%c0_7, %c0_8] : memref<1x128xf32, #tpu.memory_space<vmem>>, vector<1x128xf32>
    %12 = vector.broadcast %10 : vector<1x128xf32> to vector<8x128xf32>
    %13 = arith.mulf %9, %12 : vector<8x128xf32>
    %14 = vector.broadcast %11 : vector<1x128xf32> to vector<8x128xf32>
    %15 = arith.addf %13, %14 : vector<8x128xf32>
    %c0_9 = arith.constant 0 : index
    %c0_10 = arith.constant 0 : index
    %16 = vector.load %arg5[%c0_9, %c0_10] : memref<8x128xf32, #tpu.memory_space<vmem>>, vector<8x128xf32>
    tpu.vector_store %arg5[%c0_9, %c0_10], %15 {strides = array<i32>} : memref<8x128xf32, #tpu.memory_space<vmem>>, vector<8x128xf32>,
    return
  }
  func.func @transform_0(%arg0: i32) -> (i32, i32) {
    %c0_i32 = arith.constant 0 : i32
    %c0_i32_0 = arith.constant 0 : i32
    return %arg0, %c0_i32 : i32, i32
  }
  func.func @transform_1(%arg0: i32) -> (i32, i32) {
    %c0_i32 = arith.constant 0 : i32
    %c0_i32_0 = arith.constant 0 : i32
    %c0_i32_1 = arith.constant 0 : i32
    return %c0_i32, %c0_i32_0 : i32, i32
  }
  func.func @transform_2(%arg0: i32) -> (i32, i32) {
    %c0_i32 = arith.constant 0 : i32
    %c0_i32_0 = arith.constant 0 : i32
    %c0_i32_1 = arith.constant 0 : i32
    return %c0_i32, %c0_i32_0 : i32, i32
  }
  func.func @transform_3(%arg0: i32) -> (i32, i32) {
    %c0_i32 = arith.constant 0 : i32
    %c0_i32_0 = arith.constant 0 : i32
    %c0_i32_1 = arith.constant 0 : i32
    return %c0_i32, %c0_i32_0 : i32, i32
  }
  func.func @transform_4(%arg0: i32) -> (i32, i32) {
    %c0_i32 = arith.constant 0 : i32
    %c0_i32_0 = arith.constant 0 : i32
    return %arg0, %c0_i32 : i32, i32
  }
}

</mosaic_0001>

<llo_original>
// kernel: tpu_custom_call.1
$region0: #{tpu_custom_call.1}
  #allocation0 [shape = 'u32[]', space=smem, size = 0x4, offset = 0x4, fixed_abs, tag = 'smem constant byte address 0x4 - core index']
  #allocation1 [shape = 'u32[144,128]{1,0:T(1,128)}', space=vmem, size = 0x12000, scoped, tag = 'internal scratch']
  %s0 = inlined_call_operand.hbm [shape: f32[8,128], index: 0, kind: input, shape index: {}]
  %s1 = inlined_call_operand.vmem [shape: f32[1,128], index: 1, kind: input, shape index: {}]
  %s2 = inlined_call_operand.vmem [shape: f32[1,128], index: 2, kind: input, shape index: {}]
  %s3 = inlined_call_operand.hbm [shape: f32[128,128], index: 3, kind: input, shape index: {}]
  %s4 = inlined_call_operand.hbm [shape: f32[8,128], index: 4, kind: output, shape index: {}]
  %s5 = sld [smem:[#allocation0]]
  $region34: #{tpu_custom_call.1} parent=0
    _
  %s7 = ssub.s32 1, %s5
  %s8 = scalar_select 0, %s7, %s5
  $region1: #{tpu_custom_call.1} parent=0
    #allocation2 [shape = 'u8[4096]{0}', space=vmem, size = 0x1000, scoped, tag = 'input window, operand 0, single buffered']
    #allocation3 [shape = 's32[1]{0}', space=sflag, size = 0x4, scoped, tag = 'scoped memory for tpu_custom_call.1']
    #allocation4 [shape = 's32[1]{0}', space=sflag, size = 0x4, scoped, tag = 'scoped memory for tpu_custom_call.1']
    #allocation5 [shape = 'u8[65536]{0}', space=vmem, size = 0x10000, scoped, tag = 'input window, operand 3, single buffered']
    #allocation6 [shape = 's32[1]{0}', space=sflag, size = 0x4, scoped, tag = 'scoped memory for tpu_custom_call.1']
    #allocation7 [shape = 'u8[4096]{0}', space=vmem, size = 0x1000, scoped, tag = 'output window, operand 0, single buffered']
    %9 = vsyncpa [#allocation3], 0
    %10 = vsyncpa [#allocation6], 0
    %11 = vsyncpa [#allocation4], 0
    // Predicated region
    $region2: #{tpu_custom_call.1} parent=1 // pred_check
      _
    $region3: #{tpu_custom_call.1} parent=1 // pred_check_branch
      %13 = sbr.rel (0) target = $region5
    $region4: #{tpu_custom_call.1} parent=1 // pred_region
      %s15 = ssub.s32 128, 128
      %16 = vsyncadd [#allocation3], %s15
      %s18 = sshll.u32 [#allocation2], 4
      %s19 = int_to_ptr.vmem [resolvable:$true] %s18
      %21 = dma.hbm_to_vmem [thread:$0]  %s0, 128, %s19, [#allocation3]
    $region5: #{tpu_custom_call.1} parent=1 // pred_fallthru
      _
    // Predicated region
    $region6: #{tpu_custom_call.1} parent=1 // pred_check
      _
    $region7: #{tpu_custom_call.1} parent=1 // pred_check_branch
      %23 = sbr.rel (0) target = $region9
    $region8: #{tpu_custom_call.1} parent=1 // pred_region
      _
    $region9: #{tpu_custom_call.1} parent=1 // pred_fallthru
      _
    // Predicated region
    $region10: #{tpu_custom_call.1} parent=1 // pred_check
      _
    $region11: #{tpu_custom_call.1} parent=1 // pred_check_branch
      %25 = sbr.rel (0) target = $region13
    $region12: #{tpu_custom_call.1} parent=1 // pred_region
      _
    $region13: #{tpu_custom_call.1} parent=1 // pred_fallthru
      _
    // Predicated region
    $region14: #{tpu_custom_call.1} parent=1 // pred_check
      _
    $region15: #{tpu_custom_call.1} parent=1 // pred_check_branch
      %27 = sbr.rel (0) target = $region17
    $region16: #{tpu_custom_call.1} parent=1 // pred_region
      %s29 = ssub.s32 2048, 2048
      %30 = vsyncadd [#allocation6], %s29
      %s31 = sshll.u32 [#allocation5], 4
      %s32 = int_to_ptr.vmem [resolvable:$true] %s31
      %37 = dma.hbm_to_vmem [thread:$0]  %s3, 2048, %s32, [#allocation6], 128, 128, 8
    $region17: #{tpu_custom_call.1} parent=1 // pred_fallthru
      _
    // Predicated region
    $region18: #{tpu_custom_call.1} parent=1 // pred_check
      _
    $region19: #{tpu_custom_call.1} parent=1 // pred_check_branch
      %39 = sbr.rel (0) target = $region21
    $region20: #{tpu_custom_call.1} parent=1 // pred_region
      %40 = dma.done [#allocation3], 128
    $region21: #{tpu_custom_call.1} parent=1 // pred_fallthru
      _
    // Predicated region
    $region22: #{tpu_custom_call.1} parent=1 // pred_check
      _
    $region23: #{tpu_custom_call.1} parent=1 // pred_check_branch
      %42 = sbr.rel (0) target = $region25
    $region24: #{tpu_custom_call.1} parent=1 // pred_region
      %43 = dma.done [#allocation6], 2048
    $region25: #{tpu_custom_call.1} parent=1 // pred_fallthru
      _
    %v44 = vld [vmem:[#allocation2] sm:$0xff]
    %v45 = vld [vmem:[#allocation5] sm:$0xff]
    %v46 = vld [vmem:[#allocation5 + $0x8] sm:$0xff]
    %v47 = vld [vmem:[#allocation5 + $0x10] sm:$0xff]
    %v48 = vld [vmem:[#allocation5 + $0x18] sm:$0xff]
    %v49 = vld [vmem:[#allocation5 + $0x20] sm:$0xff]
    %v50 = vld [vmem:[#allocation5 + $0x28] sm:$0xff]
    %v51 = vld [vmem:[#allocation5 + $0x30] sm:$0xff]
    %v52 = vld [vmem:[#allocation5 + $0x38] sm:$0xff]
    %v53 = vld [vmem:[#allocation5 + $0x40] sm:$0xff]
    %v54 = vld [vmem:[#allocation5 + $0x48] sm:$0xff]
    %v55 = vld [vmem:[#allocation5 + $0x50] sm:$0xff]
    %v56 = vld [vmem:[#allocation5 + $0x58] sm:$0xff]
    %v57 = vld [vmem:[#allocation5 + $0x60] sm:$0xff]
    %v58 = vld [vmem:[#allocation5 + $0x68] sm:$0xff]
    %v59 = vld [vmem:[#allocation5 + $0x70] sm:$0xff]
    %v60 = vld [vmem:[#allocation5 + $0x78] sm:$0xff]
    %61 = vmatprep.subr.mxu0 0.0
    %62 = vmatpush1.msra.mxu0 %v45
    %63 = vmatprep.subr.mxu0 0.0
    %64 = vmatpush1.msra.mxu0 %v46
    %65 = vmatprep.subr.mxu0 0.0
    %66 = vmatpush1.msra.mxu0 %v47
    %67 = vmatprep.subr.mxu0 0.0
    %68 = vmatpush1.msra.mxu0 %v48
    %69 = vmatprep.subr.mxu0 0.0
    %70 = vmatpush1.msra.mxu0 %v49
    %71 = vmatprep.subr.mxu0 0.0
    %72 = vmatpush1.msra.mxu0 %v50
    %73 = vmatprep.subr.mxu0 0.0
    %74 = vmatpush1.msra.mxu0 %v51
    %75 = vmatprep.subr.mxu0 0.0
    %76 = vmatpush1.msra.mxu0 %v52
    %77 = vmatprep.subr.mxu0 0.0
    %78 = vmatpush1.msra.mxu0 %v53
    %79 = vmatprep.subr.mxu0 0.0
    %80 = vmatpush1.msra.mxu0 %v54
    %81 = vmatprep.subr.mxu0 0.0
    %82 = vmatpush1.msra.mxu0 %v55
    %83 = vmatprep.subr.mxu0 0.0
    %84 = vmatpush1.msra.mxu0 %v56
    %85 = vmatprep.subr.mxu0 0.0
    %86 = vmatpush1.msra.mxu0 %v57
    %87 = vmatprep.subr.mxu0 0.0
    %88 = vmatpush1.msra.mxu0 %v58
    %89 = vmatprep.subr.mxu0 0.0
    %90 = vmatpush1.msra.mxu0 %v59
    %91 = vmatprep.subr.mxu0 0.0
    %92 = vmatpush1.msra.mxu0 %v60
    %93 = vmatprep.subr.mxu0 0.0
    %94 = vmatpush1.msra.mxu0 0.0
    %95 = vmatprep.subr.mxu0 0.0
    %96 = vmatpush1.msra.mxu0 0.0
    %97 = vmatprep.subr.mxu0 0.0
    %98 = vmatpush1.msra.mxu0 0.0
    %99 = vmatprep.subr.mxu0 0.0
    %100 = vmatpush1.msra.mxu0 0.0
    %101 = vmatprep.subr.mxu0 0.0
    %102 = vmatpush1.msra.mxu0 0.0
    %103 = vmatprep.subr.mxu0 0.0
    %104 = vmatpush1.msra.mxu0 0.0
    %105 = vmatprep.subr.mxu0 0.0
    %106 = vmatpush1.msra.mxu0 0.0
    %107 = vmatprep.subr.mxu0 0.0
    %108 = vmatpush1.msra.mxu0 0.0
    %109 = vmatprep.subr.mxu0 0.0
    %110 = vmatpush1.msra.mxu0 0.0
    %111 = vmatprep.subr.mxu0 0.0
    %112 = vmatpush1.msra.mxu0 0.0
    %113 = vmatprep.subr.mxu0 0.0
    %114 = vmatpush1.msra.mxu0 0.0
    %115 = vmatprep.subr.mxu0 0.0
    %116 = vmatpush1.msra.mxu0 0.0
    %117 = vmatprep.subr.mxu0 0.0
    %118 = vmatpush1.msra.mxu0 0.0
    %119 = vmatprep.subr.mxu0 0.0
    %120 = vmatpush1.msra.mxu0 0.0
    %121 = vmatprep.subr.mxu0 0.0
    %122 = vmatpush1.msra.mxu0 0.0
    %123 = vmatprep.subr.mxu0 0.0
    %124 = vmatpush1.msra.mxu0 0.0
    %125 = vmatprep.mubr.f32.mxu0 0.0
    %126 = vmatmul.mubr.f32.gmra.mrb[0].mxu0 %v44
    %v127 = vpop.f32.mrb[0].mxu0
    %v128 = vadd.f32 0.0, %v127
    %v129 = vpop.f32.mrb[0].mxu0
    %130 = vdwg.mxu0
    %v131 = vsub.f32 %v44, %v128
    %v132 = vmul.f32 %v131, %v131
    %133 = vmatprep.subr.mxu0 0.0
    %134 = vmatpush1.msra.mxu0 %v45
    %135 = vmatprep.subr.mxu0 0.0
    %136 = vmatpush1.msra.mxu0 %v46
    %137 = vmatprep.subr.mxu0 0.0
    %138 = vmatpush1.msra.mxu0 %v47
    %139 = vmatprep.subr.mxu0 0.0
    %140 = vmatpush1.msra.mxu0 %v48
    %141 = vmatprep.subr.mxu0 0.0
    %142 = vmatpush1.msra.mxu0 %v49
    %143 = vmatprep.subr.mxu0 0.0
    %144 = vmatpush1.msra.mxu0 %v50
    %145 = vmatprep.subr.mxu0 0.0
    %146 = vmatpush1.msra.mxu0 %v51
    %147 = vmatprep.subr.mxu0 0.0
    %148 = vmatpush1.msra.mxu0 %v52
    %149 = vmatprep.subr.mxu0 0.0
    %150 = vmatpush1.msra.mxu0 %v53
    %151 = vmatprep.subr.mxu0 0.0
    %152 = vmatpush1.msra.mxu0 %v54
    %153 = vmatprep.subr.mxu0 0.0
    %154 = vmatpush1.msra.mxu0 %v55
    %155 = vmatprep.subr.mxu0 0.0
    %156 = vmatpush1.msra.mxu0 %v56
    %157 = vmatprep.subr.mxu0 0.0
    %158 = vmatpush1.msra.mxu0 %v57
    %159 = vmatprep.subr.mxu0 0.0
    %160 = vmatpush1.msra.mxu0 %v58
    %161 = vmatprep.subr.mxu0 0.0
    %162 = vmatpush1.msra.mxu0 %v59
    %163 = vmatprep.subr.mxu0 0.0
    %164 = vmatpush1.msra.mxu0 %v60
    %165 = vmatprep.subr.mxu0 0.0
    %166 = vmatpush1.msra.mxu0 0.0
    %167 = vmatprep.subr.mxu0 0.0
    %168 = vmatpush1.msra.mxu0 0.0
    %169 = vmatprep.subr.mxu0 0.0
    %170 = vmatpush1.msra.mxu0 0.0
    %171 = vmatprep.subr.mxu0 0.0
    %172 = vmatpush1.msra.mxu0 0.0
    %173 = vmatprep.subr.mxu0 0.0
    %174 = vmatpush1.msra.mxu0 0.0
    %175 = vmatprep.subr.mxu0 0.0
    %176 = vmatpush1.msra.mxu0 0.0
    %177 = vmatprep.subr.mxu0 0.0
    %178 = vmatpush1.msra.mxu0 0.0
    %179 = vmatprep.subr.mxu0 0.0
    %180 = vmatpush1.msra.mxu0 0.0
    %181 = vmatprep.subr.mxu0 0.0
    %182 = vmatpush1.msra.mxu0 0.0
    %183 = vmatprep.subr.mxu0 0.0
    %184 = vmatpush1.msra.mxu0 0.0
    %185 = vmatprep.subr.mxu0 0.0
    %186 = vmatpush1.msra.mxu0 0.0
    %187 = vmatprep.subr.mxu0 0.0
    %188 = vmatpush1.msra.mxu0 0.0
    %189 = vmatprep.subr.mxu0 0.0
    %190 = vmatpush1.msra.mxu0 0.0
    %191 = vmatprep.subr.mxu0 0.0
    %192 = vmatpush1.msra.mxu0 0.0
    %193 = vmatprep.subr.mxu0 0.0
    %194 = vmatpush1.msra.mxu0 0.0
    %195 = vmatprep.subr.mxu0 0.0
    %196 = vmatpush1.msra.mxu0 0.0
    %197 = vmatprep.mubr.f32.mxu0 0.0
    %198 = vmatmul.mubr.f32.gmra.mrb[0].mxu0 %v132
    %v199 = vpop.f32.mrb[0].mxu0
    %v200 = vadd.f32 1e-05, %v199
    %v201 = vpop.f32.mrb[0].mxu0
    %202 = vdwg.mxu0
    %v203 = vrsqrt.pop %v200
    %v204 = vmul.f32 %v131, %v203
    %v205 = vld [vmem:[%s1] sm:$0x1]
    %v206 = vld [vmem:[%s2] sm:$0x1]
    %v208 = vlaneseq
    %v209 = vshrl.u32 %v208, 7
    %v210 = vsub.s32 0, %v209
    %v211 = vrot.slane %v205, %v210
    %v213 = vmul.f32 %v204, %v211
    %v215 = vlaneseq
    %v216 = vshrl.u32 %v215, 7
    %v217 = vsub.s32 0, %v216
    %v218 = vrot.slane %v206, %v217
    %v220 = vadd.f32 %v213, %v218
    %221 = vst [vmem:[#allocation7] sm:$0xff] %v220
    // Predicated region
    $region26: #{tpu_custom_call.1} parent=1 // pred_check
      _
    $region27: #{tpu_custom_call.1} parent=1 // pred_check_branch
      %223 = sbr.rel (0) target = $region29
    $region28: #{tpu_custom_call.1} parent=1 // pred_region
      %s225 = ssub.s32 128, 128
      %226 = vsyncadd [#allocation4], %s225
      %s228 = sshll.u32 [#allocation7], 4
      %s229 = int_to_ptr.vmem [resolvable:$true] %s228
      %231 = dma.vmem_to_hbm [thread:$0]  %s229, 128, %s4, [#allocation4]
    $region29: #{tpu_custom_call.1} parent=1 // pred_fallthru
      _
    // Predicated region
    $region30: #{tpu_custom_call.1} parent=1 // pred_check
      _
    $region31: #{tpu_custom_call.1} parent=1 // pred_check_branch
      %233 = sbr.rel (0) target = $region33
    $region32: #{tpu_custom_call.1} parent=1 // pred_region
      %234 = dma.done [#allocation4], 128
    $region33: #{tpu_custom_call.1} parent=1 // pred_fallthru
      _
    %235 = vsyncpa [#allocation3], 1
    %236 = vsyncpa [#allocation6], 1
    %237 = vsyncpa [#allocation4], 1

</llo_original>
